<compile_context>
chip_gen: v7x
topology: tpu7x:2x2x1
jax: 0.10.0
libtpu: 0.0.40
codegen_flags: <defaults>
</compile_context>

<pallas_src>
import functools

import jax
import jax.numpy as jnp
from jax.experimental import pallas as pl
from jax.experimental.pallas import tpu as pltpu


def _multitask_loss_kernel(va_pred_ref, au_pred_ref, expr_pred_ref,
                           v_t_ref, a_t_ref, au_t_ref, expr_t_ref,
                           unc_ref, out_ref, *, learned):
    f32 = jnp.float32

    va_p = va_pred_ref[...].astype(f32)        # (B, 2) valence/arousal logits
    au_p = au_pred_ref[...].astype(f32)        # (B, A) AU logits
    ex_p = expr_pred_ref[...].astype(f32)      # (B, C) expression logits
    v_t = v_t_ref[...]                         # (B, 1) f32, ignore = -10
    a_t = a_t_ref[...]                         # (B, 1) f32, ignore = -10
    au_t = au_t_ref[...]                       # (B, A) f32, ignore = -1
    ex_t = expr_t_ref[...]                     # (B, 1) int32, ignore = -1

    B = va_p.shape[0]
    A = au_p.shape[1]
    C = ex_p.shape[1]

    def _sum11(x):
        # Full reduction kept as a (1, 1) array (lane reduce then sublane
        # reduce) so pl.reciprocal / jnp.where stay on the vector path.
        return jnp.sum(jnp.sum(x, axis=-1, keepdims=True), axis=0, keepdims=True)

    # ---- CCC (torch CCCloss), ignore_index = -10 ---------------------------
    def _ccc(pred, targ):
        m = (targ != f32(-10.0)).astype(f32)                  # (B, 1)
        n = _sum11(m)                                         # (1, 1) valid count
        inv_n = pl.reciprocal(n, approx=True)                 # EUP; inf when n == 0
        inv_nm1 = pl.reciprocal(n - 1.0, approx=True)         # unbiased .var() denom
        sp = _sum11(pred * m)
        st = _sum11(targ * m)
        mp = sp * inv_n                                       # NaN when n == 0 (torch mean of empty)
        mt = st * inv_n
        dp = (pred - mp) * m
        dt = (targ - mt) * m
        cov = _sum11(dp * dt) * inv_n                         # biased (.mean())
        var_p = _sum11(dp * dp) * inv_nm1                     # unbiased (.var())
        var_t = _sum11(dt * dt) * inv_nm1
        # Final ratio kept as an exact divide (parity with torch); 0/0 and
        # degenerate denominators give NaN which the clamp below zeroes,
        # exactly like torch's loss[isnan] = 0.
        ccc = 2.0 * cov / (var_p + var_t + (mp - mt) ** 2)
        ccc = jnp.where(jnp.isnan(ccc), f32(0.0), ccc)
        return jnp.sum(ccc), jnp.sum(n)

    v_loss, va_bs = _ccc(va_p[:, 0:1], v_t)
    a_loss, _ = _ccc(va_p[:, 1:2], a_t)
    va_loss = 1.0 - 0.5 * (v_loss + a_loss)

    # ---- BCE-with-logits over AUs (torch BCELossWithIgnore), ignore = -1 ---
    m_au = (au_t != f32(-1.0)).astype(f32)
    bce = jnp.maximum(au_p, 0.0) - au_p * au_t + jnp.log1p(jnp.exp(-jnp.abs(au_p)))
    sum_bce = _sum11(bce * m_au)
    n_au = _sum11(m_au)
    mean_bce = sum_bce * pl.reciprocal(jnp.maximum(n_au, f32(1.0)), approx=True)
    # torch: BCELossWithIgnore applies loss[isnan] = 0, so the all-ignored
    # case yields 0 (not NaN).
    au_loss = jnp.sum(jnp.where(n_au > 0.0, mean_bce, f32(0.0)))
    # torch valid() masks whole rows (its reshape(-1, A) requires row-uniform
    # masks), so the kept-row count is (#valid elements) / A.
    au_bs = jnp.sum(n_au) * f32(1.0 / A)

    # ---- Cross-entropy for expression (torch CCEloss), ignore = -1 ---------
    cm = (ex_t != -1).astype(f32)                             # (B, 1)
    mx = jnp.max(ex_p, axis=-1, keepdims=True)                # (B, 1)
    lse = mx + jnp.log(jnp.sum(jnp.exp(ex_p - mx), axis=-1, keepdims=True))
    onehot = (jax.lax.broadcasted_iota(jnp.int32, (B, C), 1) == ex_t).astype(f32)
    picked = jnp.sum(ex_p * onehot, axis=-1, keepdims=True)   # (B, 1)
    ce = (lse - picked) * cm                                  # ignored rows -> 0
    sum_ce = _sum11(ce)
    n_ex = _sum11(cm)
    mean_ce = sum_ce * pl.reciprocal(jnp.maximum(n_ex, f32(1.0)), approx=True)
    # torch CrossEntropyLoss(ignore_index=-1, reduction='mean') yields NaN
    # when every target is ignored (0/0); preserve that explicitly.
    expr_loss = jnp.sum(jnp.where(n_ex > 0.0, mean_ce, jnp.float32(jnp.nan)))

    # ---- calculate_total_loss, folded into the kernel ----------------------
    if learned:
        u = unc_ref[...].astype(f32)                 # (1, 4): [u_va, u_au, u_ex, 0]
        w = 0.5 * jnp.exp(-2.0 * u)                  # EUP vector exp (weights in-kernel)
        const = 0.5 * jnp.sum(u * u)                 # 0.5 * (u_va^2 + u_au^2 + u_ex^2)
        w_va = jnp.sum(w[:, 0:1])
        w_au = jnp.sum(w[:, 1:2])
        w_ex = jnp.sum(w[:, 2:3])
        total = w_va * va_loss + w_au * au_loss + w_ex * expr_loss + const
    else:   # "fixed"
        total = va_loss + au_loss + expr_loss

    out_ref[0] = total
    out_ref[1] = va_loss
    out_ref[2] = v_loss
    out_ref[3] = a_loss
    out_ref[4] = au_loss
    out_ref[5] = expr_loss
    out_ref[6] = va_bs
    out_ref[7] = au_bs


def multitask_loss(pred, target, *, loss_type="learned",
                   loss_uncertainties=(0.1, 0.2, 0.3)):
    """JAX/Pallas equivalent of MultiTaskLoss.forward (single fused kernel)."""
    va_pred, au_pred, expr_pred = pred
    v_target, a_target, au_target, expr_target = target
    B = va_pred.shape[0]
    A = au_pred.shape[1]
    C = expr_pred.shape[1]
    f32 = jnp.float32

    if loss_type == "fixed":
        learned = False
    elif loss_type == "learned":
        learned = True
    else:
        raise ValueError(loss_type)

    # Only free reshapes / dtype fixes in the wrapper; predictions stay in
    # their native dtype and are cast inside the kernel.
    v_t = jnp.asarray(v_target, f32).reshape(B, 1)
    a_t = jnp.asarray(a_target, f32).reshape(B, 1)
    au_t = jnp.asarray(au_target, f32)
    ex_t = jnp.asarray(expr_target, jnp.int32).reshape(B, 1)

    u_va, u_au, u_ex = loss_uncertainties
    unc = jnp.stack([jnp.asarray(u_va, f32), jnp.asarray(u_au, f32),
                     jnp.asarray(u_ex, f32), jnp.zeros((), f32)]).reshape(1, 4)

    ins = (va_pred, au_pred, expr_pred, v_t, a_t, au_t, ex_t, unc)
    in_bytes = sum(int(x.size) * x.dtype.itemsize for x in ins)
    cost = pl.CostEstimate(
        flops=int(24 * B + 8 * B * A + 8 * B * C + 64),
        transcendentals=int(2 * B * A + B * C + B + 16),
        bytes_accessed=int(in_bytes + 8 * 4),
    )

    kernel = functools.partial(_multitask_loss_kernel, learned=learned)
    vmem = pltpu.MemorySpace.VMEM
    smem = pltpu.MemorySpace.SMEM
    out = pl.pallas_call(
        kernel,
        out_shape=jax.ShapeDtypeStruct((8,), f32),
        in_specs=[pl.BlockSpec(memory_space=vmem) for _ in range(len(ins))],
        out_specs=pl.BlockSpec(memory_space=smem),
        cost_estimate=cost,
    )(*ins)

    total_loss = out[0]
    va_loss, v_loss, a_loss = out[1], out[2], out[3]
    au_loss, expr_loss = out[4], out[5]
    va_bs = jnp.round(out[6]).astype(jnp.int32)
    au_bs = jnp.round(out[7]).astype(jnp.int32)
    return total_loss, va_bs, au_bs, (va_loss, v_loss, a_loss, au_loss, expr_loss)


if __name__ == "__main__":
    key = jax.random.PRNGKey(0)
    B, A, C = 16, 8, 8     # batch, #action-units, #expression classes
    ks = jax.random.split(key, 7)

    va_pred = jax.random.normal(ks[0], (B, 2), jnp.float32)
    au_pred = jax.random.normal(ks[1], (B, A), jnp.float32)
    expr_pred = jax.random.normal(ks[2], (B, C), jnp.float32)

    v_target = jax.random.uniform(ks[3], (B,), jnp.float32, -1.0, 1.0)
    v_target = v_target.at[0].set(-10.0)                      # ignored sample
    a_target = jax.random.uniform(ks[4], (B,), jnp.float32, -1.0, 1.0)
    a_target = a_target.at[3].set(-10.0)                      # ignored sample
    au_target = (jax.random.uniform(ks[5], (B, A)) > 0.5).astype(jnp.float32)
    au_target = au_target.at[1].set(-1.0)                     # whole row ignored
    expr_target = jax.random.randint(ks[6], (B,), 0, C).astype(jnp.int32)
    expr_target = expr_target.at[2].set(-1)                   # ignored sample

    # deterministic "learned" uncertainty parameters (would be nn.Parameter)
    loss_uncertainties = (jnp.float32(0.1), jnp.float32(0.2), jnp.float32(0.3))

    total_loss, va_bs, au_bs, details = multitask_loss(
        (va_pred, au_pred, expr_pred),
        (v_target, a_target, au_target, expr_target),
        loss_type="learned",
        loss_uncertainties=loss_uncertainties,
    )

    jax.block_until_ready(total_loss)
    jax.block_until_ready(details)
    print("KERNEL_OK")
</pallas_src>

<mosaic_0001>
module attributes {stable_mosaic.version = 11 : i64} {
  func.func @_multitask_loss_kernel(%arg0: memref<16x2xf32, #tpu.memory_space<vmem>>, %arg1: memref<16x8xf32, #tpu.memory_space<vmem>>, %arg2: memref<16x8xf32, #tpu.memory_space<vmem>>, %arg3: memref<16x1xf32, #tpu.memory_space<vmem>>, %arg4: memref<16x1xf32, #tpu.memory_space<vmem>>, %arg5: memref<16x8xf32, #tpu.memory_space<vmem>>, %arg6: memref<16x1xi32, #tpu.memory_space<vmem>>, %arg7: memref<1x4xf32, #tpu.memory_space<vmem>>, %arg8: memref<8xf32, #tpu.memory_space<smem>>) attributes {dimension_semantics = [], scalar_prefetch = 0 : i64, scratch_operands = 0 : i64, tpu.core_type = #tpu.core_type<tc>} {
    %c0 = arith.constant 0 : index
    %c0_0 = arith.constant 0 : index
    %0 = vector.load %arg0[%c0, %c0_0] : memref<16x2xf32, #tpu.memory_space<vmem>>, vector<16x2xf32>
    %c0_1 = arith.constant 0 : index
    %c0_2 = arith.constant 0 : index
    %1 = vector.load %arg1[%c0_1, %c0_2] : memref<16x8xf32, #tpu.memory_space<vmem>>, vector<16x8xf32>
    %c0_3 = arith.constant 0 : index
    %c0_4 = arith.constant 0 : index
    %2 = vector.load %arg2[%c0_3, %c0_4] : memref<16x8xf32, #tpu.memory_space<vmem>>, vector<16x8xf32>
    %c0_5 = arith.constant 0 : index
    %c0_6 = arith.constant 0 : index
    %3 = vector.load %arg3[%c0_5, %c0_6] : memref<16x1xf32, #tpu.memory_space<vmem>>, vector<16x1xf32>
    %c0_7 = arith.constant 0 : index
    %c0_8 = arith.constant 0 : index
    %4 = vector.load %arg4[%c0_7, %c0_8] : memref<16x1xf32, #tpu.memory_space<vmem>>, vector<16x1xf32>
    %c0_9 = arith.constant 0 : index
    %c0_10 = arith.constant 0 : index
    %5 = vector.load %arg5[%c0_9, %c0_10] : memref<16x8xf32, #tpu.memory_space<vmem>>, vector<16x8xf32>
    %c0_11 = arith.constant 0 : index
    %c0_12 = arith.constant 0 : index
    %6 = vector.load %arg6[%c0_11, %c0_12] : memref<16x1xi32, #tpu.memory_space<vmem>>, vector<16x1xi32>
    %7 = vector.extract_strided_slice %0 {offsets = [0, 0], sizes = [16, 1], strides = [1, 1]} : vector<16x2xf32> to vector<16x1xf32>
    %cst = arith.constant -1.000000e+01 : f32
    %8 = vector.broadcast %cst : f32 to vector<16x1xf32>
    %9 = arith.cmpf one, %3, %8 : vector<16x1xf32>
    %10 = arith.extui %9 : vector<16x1xi1> to vector<16x1xi32>
    %11 = arith.sitofp %10 : vector<16x1xi32> to vector<16x1xf32>
    %cst_13 = arith.constant dense<0.000000e+00> : vector<16xf32>
    %12 = vector.multi_reduction <add>, %11, %cst_13 [1] : vector<16x1xf32> to vector<16xf32>
    %13 = vector.shape_cast %12 : vector<16xf32> to vector<16x1xf32>
    %cst_14 = arith.constant dense<0.000000e+00> : vector<1xf32>
    %14 = vector.multi_reduction <add>, %13, %cst_14 [0] : vector<16x1xf32> to vector<1xf32>
    %15 = vector.shape_cast %14 : vector<1xf32> to vector<1x1xf32>
    %16 = tpu.reciprocal %15 {approx = true} : vector<1x1xf32> -> vector<1x1xf32>
    %cst_15 = arith.constant 1.000000e+00 : f32
    %17 = vector.broadcast %cst_15 : f32 to vector<1x1xf32>
    %18 = arith.subf %15, %17 : vector<1x1xf32>
    %19 = tpu.reciprocal %18 {approx = true} : vector<1x1xf32> -> vector<1x1xf32>
    %20 = arith.mulf %7, %11 : vector<16x1xf32>
    %cst_16 = arith.constant dense<0.000000e+00> : vector<16xf32>
    %21 = vector.multi_reduction <add>, %20, %cst_16 [1] : vector<16x1xf32> to vector<16xf32>
    %22 = vector.shape_cast %21 : vector<16xf32> to vector<16x1xf32>
    %cst_17 = arith.constant dense<0.000000e+00> : vector<1xf32>
    %23 = vector.multi_reduction <add>, %22, %cst_17 [0] : vector<16x1xf32> to vector<1xf32>
    %24 = vector.shape_cast %23 : vector<1xf32> to vector<1x1xf32>
    %25 = arith.mulf %3, %11 : vector<16x1xf32>
    %cst_18 = arith.constant dense<0.000000e+00> : vector<16xf32>
    %26 = vector.multi_reduction <add>, %25, %cst_18 [1] : vector<16x1xf32> to vector<16xf32>
    %27 = vector.shape_cast %26 : vector<16xf32> to vector<16x1xf32>
    %cst_19 = arith.constant dense<0.000000e+00> : vector<1xf32>
    %28 = vector.multi_reduction <add>, %27, %cst_19 [0] : vector<16x1xf32> to vector<1xf32>
    %29 = vector.shape_cast %28 : vector<1xf32> to vector<1x1xf32>
    %30 = arith.mulf %24, %16 : vector<1x1xf32>
    %31 = arith.mulf %29, %16 : vector<1x1xf32>
    %32 = vector.broadcast %30 : vector<1x1xf32> to vector<16x1xf32>
    %33 = arith.subf %7, %32 : vector<16x1xf32>
    %34 = arith.mulf %33, %11 : vector<16x1xf32>
    %35 = vector.broadcast %31 : vector<1x1xf32> to vector<16x1xf32>
    %36 = arith.subf %3, %35 : vector<16x1xf32>
    %37 = arith.mulf %36, %11 : vector<16x1xf32>
    %38 = arith.mulf %34, %37 : vector<16x1xf32>
    %cst_20 = arith.constant dense<0.000000e+00> : vector<16xf32>
    %39 = vector.multi_reduction <add>, %38, %cst_20 [1] : vector<16x1xf32> to vector<16xf32>
    %40 = vector.shape_cast %39 : vector<16xf32> to vector<16x1xf32>
    %cst_21 = arith.constant dense<0.000000e+00> : vector<1xf32>
    %41 = vector.multi_reduction <add>, %40, %cst_21 [0] : vector<16x1xf32> to vector<1xf32>
    %42 = vector.shape_cast %41 : vector<1xf32> to vector<1x1xf32>
    %43 = arith.mulf %42, %16 : vector<1x1xf32>
    %44 = arith.mulf %34, %34 : vector<16x1xf32>
    %cst_22 = arith.constant dense<0.000000e+00> : vector<16xf32>
    %45 = vector.multi_reduction <add>, %44, %cst_22 [1] : vector<16x1xf32> to vector<16xf32>
    %46 = vector.shape_cast %45 : vector<16xf32> to vector<16x1xf32>
    %cst_23 = arith.constant dense<0.000000e+00> : vector<1xf32>
    %47 = vector.multi_reduction <add>, %46, %cst_23 [0] : vector<16x1xf32> to vector<1xf32>
    %48 = vector.shape_cast %47 : vector<1xf32> to vector<1x1xf32>
    %49 = arith.mulf %48, %19 : vector<1x1xf32>
    %50 = arith.mulf %37, %37 : vector<16x1xf32>
    %cst_24 = arith.constant dense<0.000000e+00> : vector<16xf32>
    %51 = vector.multi_reduction <add>, %50, %cst_24 [1] : vector<16x1xf32> to vector<16xf32>
    %52 = vector.shape_cast %51 : vector<16xf32> to vector<16x1xf32>
    %cst_25 = arith.constant dense<0.000000e+00> : vector<1xf32>
    %53 = vector.multi_reduction <add>, %52, %cst_25 [0] : vector<16x1xf32> to vector<1xf32>
    %54 = vector.shape_cast %53 : vector<1xf32> to vector<1x1xf32>
    %55 = arith.mulf %54, %19 : vector<1x1xf32>
    %cst_26 = arith.constant 2.000000e+00 : f32
    %56 = vector.broadcast %cst_26 : f32 to vector<1x1xf32>
    %57 = arith.mulf %56, %43 : vector<1x1xf32>
    %58 = arith.addf %49, %55 : vector<1x1xf32>
    %59 = arith.subf %30, %31 : vector<1x1xf32>
    %60 = arith.mulf %59, %59 : vector<1x1xf32>
    %61 = arith.addf %58, %60 : vector<1x1xf32>
    %62 = arith.divf %57, %61 : vector<1x1xf32>
    %63 = arith.cmpf one, %62, %62 : vector<1x1xf32>
    %cst_27 = arith.constant 0.000000e+00 : f32
    %64 = vector.broadcast %cst_27 : f32 to vector<1x1xf32>
    %65 = arith.select %63, %64, %62 : vector<1x1xi1>, vector<1x1xf32>
    %66 = vector.shape_cast %65 : vector<1x1xf32> to vector<1x1x1xf32>
    %cst_28 = arith.constant dense<0.000000e+00> : vector<1xf32>
    %67 = vector.multi_reduction <add>, %66, %cst_28 [1, 2] : vector<1x1x1xf32> to vector<1xf32>
    %68 = vector.shape_cast %67 : vector<1xf32> to vector<1x1x1xf32>
    %69 = vector.extract %68[0, 0, 0] : f32 from vector<1x1x1xf32>
    %70 = vector.shape_cast %15 : vector<1x1xf32> to vector<1x1x1xf32>
    %cst_29 = arith.constant dense<0.000000e+00> : vector<1xf32>
    %71 = vector.multi_reduction <add>, %70, %cst_29 [1, 2] : vector<1x1x1xf32> to vector<1xf32>
    %72 = vector.shape_cast %71 : vector<1xf32> to vector<1x1x1xf32>
    %73 = vector.extract %72[0, 0, 0] : f32 from vector<1x1x1xf32>
    %74 = vector.extract_strided_slice %0 {offsets = [0, 1], sizes = [16, 1], strides = [1, 1]} : vector<16x2xf32> to vector<16x1xf32>
    %cst_30 = arith.constant -1.000000e+01 : f32
    %75 = vector.broadcast %cst_30 : f32 to vector<16x1xf32>
    %76 = arith.cmpf one, %4, %75 : vector<16x1xf32>
    %77 = arith.extui %76 : vector<16x1xi1> to vector<16x1xi32>
    %78 = arith.sitofp %77 : vector<16x1xi32> to vector<16x1xf32>
    %cst_31 = arith.constant dense<0.000000e+00> : vector<16xf32>
    %79 = vector.multi_reduction <add>, %78, %cst_31 [1] : vector<16x1xf32> to vector<16xf32>
    %80 = vector.shape_cast %79 : vector<16xf32> to vector<16x1xf32>
    %cst_32 = arith.constant dense<0.000000e+00> : vector<1xf32>
    %81 = vector.multi_reduction <add>, %80, %cst_32 [0] : vector<16x1xf32> to vector<1xf32>
    %82 = vector.shape_cast %81 : vector<1xf32> to vector<1x1xf32>
    %83 = tpu.reciprocal %82 {approx = true} : vector<1x1xf32> -> vector<1x1xf32>
    %cst_33 = arith.constant 1.000000e+00 : f32
    %84 = vector.broadcast %cst_33 : f32 to vector<1x1xf32>
    %85 = arith.subf %82, %84 : vector<1x1xf32>
    %86 = tpu.reciprocal %85 {approx = true} : vector<1x1xf32> -> vector<1x1xf32>
    %87 = arith.mulf %74, %78 : vector<16x1xf32>
    %cst_34 = arith.constant dense<0.000000e+00> : vector<16xf32>
    %88 = vector.multi_reduction <add>, %87, %cst_34 [1] : vector<16x1xf32> to vector<16xf32>
    %89 = vector.shape_cast %88 : vector<16xf32> to vector<16x1xf32>
    %cst_35 = arith.constant dense<0.000000e+00> : vector<1xf32>
    %90 = vector.multi_reduction <add>, %89, %cst_35 [0] : vector<16x1xf32> to vector<1xf32>
    %91 = vector.shape_cast %90 : vector<1xf32> to vector<1x1xf32>
    %92 = arith.mulf %4, %78 : vector<16x1xf32>
    %cst_36 = arith.constant dense<0.000000e+00> : vector<16xf32>
    %93 = vector.multi_reduction <add>, %92, %cst_36 [1] : vector<16x1xf32> to vector<16xf32>
    %94 = vector.shape_cast %93 : vector<16xf32> to vector<16x1xf32>
    %cst_37 = arith.constant dense<0.000000e+00> : vector<1xf32>
    %95 = vector.multi_reduction <add>, %94, %cst_37 [0] : vector<16x1xf32> to vector<1xf32>
    %96 = vector.shape_cast %95 : vector<1xf32> to vector<1x1xf32>
    %97 = arith.mulf %91, %83 : vector<1x1xf32>
    %98 = arith.mulf %96, %83 : vector<1x1xf32>
    %99 = vector.broadcast %97 : vector<1x1xf32> to vector<16x1xf32>
    %100 = arith.subf %74, %99 : vector<16x1xf32>
    %101 = arith.mulf %100, %78 : vector<16x1xf32>
    %102 = vector.broadcast %98 : vector<1x1xf32> to vector<16x1xf32>
    %103 = arith.subf %4, %102 : vector<16x1xf32>
    %104 = arith.mulf %103, %78 : vector<16x1xf32>
    %105 = arith.mulf %101, %104 : vector<16x1xf32>
    %cst_38 = arith.constant dense<0.000000e+00> : vector<16xf32>
    %106 = vector.multi_reduction <add>, %105, %cst_38 [1] : vector<16x1xf32> to vector<16xf32>
    %107 = vector.shape_cast %106 : vector<16xf32> to vector<16x1xf32>
    %cst_39 = arith.constant dense<0.000000e+00> : vector<1xf32>
    %108 = vector.multi_reduction <add>, %107, %cst_39 [0] : vector<16x1xf32> to vector<1xf32>
    %109 = vector.shape_cast %108 : vector<1xf32> to vector<1x1xf32>
    %110 = arith.mulf %109, %83 : vector<1x1xf32>
    %111 = arith.mulf %101, %101 : vector<16x1xf32>
    %cst_40 = arith.constant dense<0.000000e+00> : vector<16xf32>
    %112 = vector.multi_reduction <add>, %111, %cst_40 [1] : vector<16x1xf32> to vector<16xf32>
    %113 = vector.shape_cast %112 : vector<16xf32> to vector<16x1xf32>
    %cst_41 = arith.constant dense<0.000000e+00> : vector<1xf32>
    %114 = vector.multi_reduction <add>, %113, %cst_41 [0] : vector<16x1xf32> to vector<1xf32>
    %115 = vector.shape_cast %114 : vector<1xf32> to vector<1x1xf32>
    %116 = arith.mulf %115, %86 : vector<1x1xf32>
    %117 = arith.mulf %104, %104 : vector<16x1xf32>
    %cst_42 = arith.constant dense<0.000000e+00> : vector<16xf32>
    %118 = vector.multi_reduction <add>, %117, %cst_42 [1] : vector<16x1xf32> to vector<16xf32>
    %119 = vector.shape_cast %118 : vector<16xf32> to vector<16x1xf32>
    %cst_43 = arith.constant dense<0.000000e+00> : vector<1xf32>
    %120 = vector.multi_reduction <add>, %119, %cst_43 [0] : vector<16x1xf32> to vector<1xf32>
    %121 = vector.shape_cast %120 : vector<1xf32> to vector<1x1xf32>
    %122 = arith.mulf %121, %86 : vector<1x1xf32>
    %cst_44 = arith.constant 2.000000e+00 : f32
    %123 = vector.broadcast %cst_44 : f32 to vector<1x1xf32>
    %124 = arith.mulf %123, %110 : vector<1x1xf32>
    %125 = arith.addf %116, %122 : vector<1x1xf32>
    %126 = arith.subf %97, %98 : vector<1x1xf32>
    %127 = arith.mulf %126, %126 : vector<1x1xf32>
    %128 = arith.addf %125, %127 : vector<1x1xf32>
    %129 = arith.divf %124, %128 : vector<1x1xf32>
    %130 = arith.cmpf one, %129, %129 : vector<1x1xf32>
    %cst_45 = arith.constant 0.000000e+00 : f32
    %131 = vector.broadcast %cst_45 : f32 to vector<1x1xf32>
    %132 = arith.select %130, %131, %129 : vector<1x1xi1>, vector<1x1xf32>
    %133 = vector.shape_cast %132 : vector<1x1xf32> to vector<1x1x1xf32>
    %cst_46 = arith.constant dense<0.000000e+00> : vector<1xf32>
    %134 = vector.multi_reduction <add>, %133, %cst_46 [1, 2] : vector<1x1x1xf32> to vector<1xf32>
    %135 = vector.shape_cast %134 : vector<1xf32> to vector<1x1x1xf32>
    %136 = vector.extract %135[0, 0, 0] : f32 from vector<1x1x1xf32>
    %137 = arith.addf %69, %136 : f32
    %cst_47 = arith.constant 5.000000e-01 : f32
    %138 = arith.mulf %cst_47, %137 : f32
    %cst_48 = arith.constant 1.000000e+00 : f32
    %139 = arith.subf %cst_48, %138 : f32
    %cst_49 = arith.constant -1.000000e+00 : f32
    %140 = vector.broadcast %cst_49 : f32 to vector<16x8xf32>
    %141 = arith.cmpf one, %5, %140 : vector<16x8xf32>
    %142 = arith.extui %141 : vector<16x8xi1> to vector<16x8xi32>
    %143 = arith.sitofp %142 : vector<16x8xi32> to vector<16x8xf32>
    %cst_50 = arith.constant 0.000000e+00 : f32
    %144 = vector.broadcast %cst_50 : f32 to vector<16x8xf32>
    %145 = arith.maximumf %1, %144 : vector<16x8xf32>
    %146 = arith.mulf %1, %5 : vector<16x8xf32>
    %147 = arith.subf %145, %146 : vector<16x8xf32>
    %148 = math.absf %1 : vector<16x8xf32>
    %cst_51 = arith.constant 0.000000e+00 : f32
    %149 = vector.broadcast %cst_51 : f32 to vector<16x8xf32>
    %150 = arith.subf %149, %148 : vector<16x8xf32>
    %151 = math.exp %150 : vector<16x8xf32>
    %152 = math.log1p %151 : vector<16x8xf32>
    %153 = arith.addf %147, %152 : vector<16x8xf32>
    %154 = arith.mulf %153, %143 : vector<16x8xf32>
    %cst_52 = arith.constant dense<0.000000e+00> : vector<16xf32>
    %155 = vector.multi_reduction <add>, %154, %cst_52 [1] : vector<16x8xf32> to vector<16xf32>
    %156 = vector.shape_cast %155 : vector<16xf32> to vector<16x1xf32>
    %cst_53 = arith.constant dense<0.000000e+00> : vector<1xf32>
    %157 = vector.multi_reduction <add>, %156, %cst_53 [0] : vector<16x1xf32> to vector<1xf32>
    %158 = vector.shape_cast %157 : vector<1xf32> to vector<1x1xf32>
    %cst_54 = arith.constant dense<0.000000e+00> : vector<16xf32>
    %159 = vector.multi_reduction <add>, %143, %cst_54 [1] : vector<16x8xf32> to vector<16xf32>
    %160 = vector.shape_cast %159 : vector<16xf32> to vector<16x1xf32>
    %cst_55 = arith.constant dense<0.000000e+00> : vector<1xf32>
    %161 = vector.multi_reduction <add>, %160, %cst_55 [0] : vector<16x1xf32> to vector<1xf32>
    %162 = vector.shape_cast %161 : vector<1xf32> to vector<1x1xf32>
    %cst_56 = arith.constant 1.000000e+00 : f32
    %163 = vector.broadcast %cst_56 : f32 to vector<1x1xf32>
    %164 = arith.maximumf %162, %163 : vector<1x1xf32>
    %165 = tpu.reciprocal %164 {approx = true} : vector<1x1xf32> -> vector<1x1xf32>
    %166 = arith.mulf %158, %165 : vector<1x1xf32>
    %cst_57 = arith.constant 0.000000e+00 : f32
    %167 = vector.broadcast %cst_57 : f32 to vector<1x1xf32>
    %168 = arith.cmpf ogt, %162, %167 : vector<1x1xf32>
    %cst_58 = arith.constant 0.000000e+00 : f32
    %169 = vector.broadcast %cst_58 : f32 to vector<1x1xf32>
    %170 = arith.select %168, %166, %169 : vector<1x1xi1>, vector<1x1xf32>
    %171 = vector.shape_cast %170 : vector<1x1xf32> to vector<1x1x1xf32>
    %cst_59 = arith.constant dense<0.000000e+00> : vector<1xf32>
    %172 = vector.multi_reduction <add>, %171, %cst_59 [1, 2] : vector<1x1x1xf32> to vector<1xf32>
    %173 = vector.shape_cast %172 : vector<1xf32> to vector<1x1x1xf32>
    %174 = vector.extract %173[0, 0, 0] : f32 from vector<1x1x1xf32>
    %175 = vector.shape_cast %162 : vector<1x1xf32> to vector<1x1x1xf32>
    %cst_60 = arith.constant dense<0.000000e+00> : vector<1xf32>
    %176 = vector.multi_reduction <add>, %175, %cst_60 [1, 2] : vector<1x1x1xf32> to vector<1xf32>
    %177 = vector.shape_cast %176 : vector<1xf32> to vector<1x1x1xf32>
    %178 = vector.extract %177[0, 0, 0] : f32 from vector<1x1x1xf32>
    %cst_61 = arith.constant 1.250000e-01 : f32
    %179 = arith.mulf %178, %cst_61 : f32
    %c-1_i32 = arith.constant -1 : i32
    %180 = vector.broadcast %c-1_i32 : i32 to vector<16x1xi32>
    %181 = arith.cmpi ne, %6, %180 : vector<16x1xi32>
    %182 = arith.extui %181 : vector<16x1xi1> to vector<16x1xi32>
    %183 = arith.sitofp %182 : vector<16x1xi32> to vector<16x1xf32>
    %cst_62 = arith.constant dense<0xFF800000> : vector<16xf32>
    %184 = vector.multi_reduction <maximumf>, %2, %cst_62 [1] : vector<16x8xf32> to vector<16xf32>
    %185 = vector.shape_cast %184 : vector<16xf32> to vector<16x1xf32>
    %186 = vector.broadcast %185 : vector<16x1xf32> to vector<16x8xf32>
    %187 = arith.subf %2, %186 : vector<16x8xf32>
    %188 = math.exp %187 : vector<16x8xf32>
    %cst_63 = arith.constant dense<0.000000e+00> : vector<16xf32>
    %189 = vector.multi_reduction <add>, %188, %cst_63 [1] : vector<16x8xf32> to vector<16xf32>
    %190 = vector.shape_cast %189 : vector<16xf32> to vector<16x1xf32>
    %191 = math.log %190 : vector<16x1xf32>
    %192 = arith.addf %185, %191 : vector<16x1xf32>
    %193 = tpu.iota {dimensions = array<i32: 1>} : vector<16x8xi32>
    %194 = vector.broadcast %6 : vector<16x1xi32> to vector<16x8xi32>
    %195 = arith.cmpi eq, %193, %194 : vector<16x8xi32>
    %196 = arith.extui %195 : vector<16x8xi1> to vector<16x8xi32>
    %197 = arith.sitofp %196 : vector<16x8xi32> to vector<16x8xf32>
    %198 = arith.mulf %2, %197 : vector<16x8xf32>
    %cst_64 = arith.constant dense<0.000000e+00> : vector<16xf32>
    %199 = vector.multi_reduction <add>, %198, %cst_64 [1] : vector<16x8xf32> to vector<16xf32>
    %200 = vector.shape_cast %199 : vector<16xf32> to vector<16x1xf32>
    %201 = arith.subf %192, %200 : vector<16x1xf32>
    %202 = arith.mulf %201, %183 : vector<16x1xf32>
    %cst_65 = arith.constant dense<0.000000e+00> : vector<16xf32>
    %203 = vector.multi_reduction <add>, %202, %cst_65 [1] : vector<16x1xf32> to vector<16xf32>
    %204 = vector.shape_cast %203 : vector<16xf32> to vector<16x1xf32>
    %cst_66 = arith.constant dense<0.000000e+00> : vector<1xf32>
    %205 = vector.multi_reduction <add>, %204, %cst_66 [0] : vector<16x1xf32> to vector<1xf32>
    %206 = vector.shape_cast %205 : vector<1xf32> to vector<1x1xf32>
    %cst_67 = arith.constant dense<0.000000e+00> : vector<16xf32>
    %207 = vector.multi_reduction <add>, %183, %cst_67 [1] : vector<16x1xf32> to vector<16xf32>
    %208 = vector.shape_cast %207 : vector<16xf32> to vector<16x1xf32>
    %cst_68 = arith.constant dense<0.000000e+00> : vector<1xf32>
    %209 = vector.multi_reduction <add>, %208, %cst_68 [0] : vector<16x1xf32> to vector<1xf32>
    %210 = vector.shape_cast %209 : vector<1xf32> to vector<1x1xf32>
    %cst_69 = arith.constant 1.000000e+00 : f32
    %211 = vector.broadcast %cst_69 : f32 to vector<1x1xf32>
    %212 = arith.maximumf %210, %211 : vector<1x1xf32>
    %213 = tpu.reciprocal %212 {approx = true} : vector<1x1xf32> -> vector<1x1xf32>
    %214 = arith.mulf %206, %213 : vector<1x1xf32>
    %cst_70 = arith.constant 0.000000e+00 : f32
    %215 = vector.broadcast %cst_70 : f32 to vector<1x1xf32>
    %216 = arith.cmpf ogt, %210, %215 : vector<1x1xf32>
    %cst_71 = arith.constant 0x7FC00000 : f32
    %217 = vector.broadcast %cst_71 : f32 to vector<1x1xf32>
    %218 = arith.select %216, %214, %217 : vector<1x1xi1>, vector<1x1xf32>
    %219 = vector.shape_cast %218 : vector<1x1xf32> to vector<1x1x1xf32>
    %cst_72 = arith.constant dense<0.000000e+00> : vector<1xf32>
    %220 = vector.multi_reduction <add>, %219, %cst_72 [1, 2] : vector<1x1x1xf32> to vector<1xf32>
    %221 = vector.shape_cast %220 : vector<1xf32> to vector<1x1x1xf32>
    %222 = vector.extract %221[0, 0, 0] : f32 from vector<1x1x1xf32>
    %c0_73 = arith.constant 0 : index
    %c0_74 = arith.constant 0 : index
    %223 = vector.load %arg7[%c0_73, %c0_74] : memref<1x4xf32, #tpu.memory_space<vmem>>, vector<1x4xf32>
    %cst_75 = arith.constant -2.000000e+00 : f32
    %224 = vector.broadcast %cst_75 : f32 to vector<1x4xf32>
    %225 = arith.mulf %224, %223 : vector<1x4xf32>
    %226 = math.exp %225 : vector<1x4xf32>
    %cst_76 = arith.constant 5.000000e-01 : f32
    %227 = vector.broadcast %cst_76 : f32 to vector<1x4xf32>
    %228 = arith.mulf %227, %226 : vector<1x4xf32>
    %229 = arith.mulf %223, %223 : vector<1x4xf32>
    %230 = vector.shape_cast %229 : vector<1x4xf32> to vector<1x1x4xf32>
    %cst_77 = arith.constant dense<0.000000e+00> : vector<1xf32>
    %231 = vector.multi_reduction <add>, %230, %cst_77 [1, 2] : vector<1x1x4xf32> to vector<1xf32>
    %232 = vector.shape_cast %231 : vector<1xf32> to vector<1x1x1xf32>
    %233 = vector.extract %232[0, 0, 0] : f32 from vector<1x1x1xf32>
    %cst_78 = arith.constant 5.000000e-01 : f32
    %234 = arith.mulf %cst_78, %233 : f32
    %235 = vector.extract_strided_slice %228 {offsets = [0, 0], sizes = [1, 1], strides = [1, 1]} : vector<1x4xf32> to vector<1x1xf32>
    %236 = vector.shape_cast %235 : vector<1x1xf32> to vector<1x1x1xf32>
    %cst_79 = arith.constant dense<0.000000e+00> : vector<1xf32>
    %237 = vector.multi_reduction <add>, %236, %cst_79 [1, 2] : vector<1x1x1xf32> to vector<1xf32>
    %238 = vector.shape_cast %237 : vector<1xf32> to vector<1x1x1xf32>
    %239 = vector.extract %238[0, 0, 0] : f32 from vector<1x1x1xf32>
    %240 = vector.extract_strided_slice %228 {offsets = [0, 1], sizes = [1, 1], strides = [1, 1]} : vector<1x4xf32> to vector<1x1xf32>
    %241 = vector.shape_cast %240 : vector<1x1xf32> to vector<1x1x1xf32>
    %cst_80 = arith.constant dense<0.000000e+00> : vector<1xf32>
    %242 = vector.multi_reduction <add>, %241, %cst_80 [1, 2] : vector<1x1x1xf32> to vector<1xf32>
    %243 = vector.shape_cast %242 : vector<1xf32> to vector<1x1x1xf32>
    %244 = vector.extract %243[0, 0, 0] : f32 from vector<1x1x1xf32>
    %245 = vector.extract_strided_slice %228 {offsets = [0, 2], sizes = [1, 1], strides = [1, 1]} : vector<1x4xf32> to vector<1x1xf32>
    %246 = vector.shape_cast %245 : vector<1x1xf32> to vector<1x1x1xf32>
    %cst_81 = arith.constant dense<0.000000e+00> : vector<1xf32>
    %247 = vector.multi_reduction <add>, %246, %cst_81 [1, 2] : vector<1x1x1xf32> to vector<1xf32>
    %248 = vector.shape_cast %247 : vector<1xf32> to vector<1x1x1xf32>
    %249 = vector.extract %248[0, 0, 0] : f32 from vector<1x1x1xf32>
    %250 = arith.mulf %239, %139 : f32
    %251 = arith.mulf %244, %174 : f32
    %252 = arith.addf %250, %251 : f32
    %253 = arith.mulf %249, %222 : f32
    %254 = arith.addf %252, %253 : f32
    %255 = arith.addf %254, %234 : f32
    %c0_82 = arith.constant 0 : index
    %256 = memref.load %arg8[%c0_82] : memref<8xf32, #tpu.memory_space<smem>>
    memref.store %255, %arg8[%c0_82] : memref<8xf32, #tpu.memory_space<smem>>
    %c1 = arith.constant 1 : index
    %257 = memref.load %arg8[%c1] : memref<8xf32, #tpu.memory_space<smem>>
    memref.store %139, %arg8[%c1] : memref<8xf32, #tpu.memory_space<smem>>
    %c2 = arith.constant 2 : index
    %258 = memref.load %arg8[%c2] : memref<8xf32, #tpu.memory_space<smem>>
    memref.store %69, %arg8[%c2] : memref<8xf32, #tpu.memory_space<smem>>
    %c3 = arith.constant 3 : index
    %259 = memref.load %arg8[%c3] : memref<8xf32, #tpu.memory_space<smem>>
    memref.store %136, %arg8[%c3] : memref<8xf32, #tpu.memory_space<smem>>
    %c4 = arith.constant 4 : index
    %260 = memref.load %arg8[%c4] : memref<8xf32, #tpu.memory_space<smem>>
    memref.store %174, %arg8[%c4] : memref<8xf32, #tpu.memory_space<smem>>
    %c5 = arith.constant 5 : index
    %261 = memref.load %arg8[%c5] : memref<8xf32, #tpu.memory_space<smem>>
    memref.store %222, %arg8[%c5] : memref<8xf32, #tpu.memory_space<smem>>
    %c6 = arith.constant 6 : index
    %262 = memref.load %arg8[%c6] : memref<8xf32, #tpu.memory_space<smem>>
    memref.store %73, %arg8[%c6] : memref<8xf32, #tpu.memory_space<smem>>
    %c7 = arith.constant 7 : index
    %263 = memref.load %arg8[%c7] : memref<8xf32, #tpu.memory_space<smem>>
    memref.store %179, %arg8[%c7] : memref<8xf32, #tpu.memory_space<smem>>
    return
  }
}

</mosaic_0001>

<llo_original>
// kernel: tpu_custom_call.1
$region0: #{tpu_custom_call.1}
  #allocation0 [shape = 'u32[]', space=smem, size = 0x4, offset = 0x4, fixed_abs, tag = 'smem constant byte address 0x4 - core index']
  #allocation1 [shape = 'u32[144,128]{1,0:T(1,128)}', space=vmem, size = 0x12000, scoped, tag = 'internal scratch']
  %s0 = inlined_call_operand.vmem [shape: f32[16,2], index: 0, kind: input, shape index: {}]
  %s1 = inlined_call_operand.vmem [shape: f32[16,8], index: 1, kind: input, shape index: {}]
  %s2 = inlined_call_operand.vmem [shape: f32[16,8], index: 2, kind: input, shape index: {}]
  %s3 = inlined_call_operand.vmem [shape: f32[16,1], index: 3, kind: input, shape index: {}]
  %s4 = inlined_call_operand.vmem [shape: f32[16,1], index: 4, kind: input, shape index: {}]
  %s5 = inlined_call_operand.vmem [shape: f32[16,8], index: 5, kind: input, shape index: {}]
  %s6 = inlined_call_operand.vmem [shape: s32[16,1], index: 6, kind: input, shape index: {}]
  %s7 = inlined_call_operand.vmem [shape: f32[1,4], index: 7, kind: input, shape index: {}]
  %s8 = inlined_call_operand.hbm [shape: f32[8], index: 8, kind: output, shape index: {}]
  %s9 = sld [smem:[#allocation0]]
  $region42: #{tpu_custom_call.1} parent=0
    _
  %s11 = ssub.s32 1, %s9
  %s12 = scalar_select 0, %s11, %s9
  $region1: #{tpu_custom_call.1} parent=0
    #allocation2 [shape = 'u8[512]{0}', space=smem, size = 0x200, scoped, tag = 'output window, operand 0, single buffered']
    #allocation3 [shape = 's32[1]{0}', space=sflag, size = 0x4, scoped, tag = 'scoped memory for tpu_custom_call.1']
    %13 = vsyncpa [#allocation3], 0
    // Predicated region
    $region2: #{tpu_custom_call.1} parent=1 // pred_check
      _
    $region3: #{tpu_custom_call.1} parent=1 // pred_check_branch
      %15 = sbr.rel (0) target = $region5
    $region4: #{tpu_custom_call.1} parent=1 // pred_region
      _
    $region5: #{tpu_custom_call.1} parent=1 // pred_fallthru
      _
    // Predicated region
    $region6: #{tpu_custom_call.1} parent=1 // pred_check
      _
    $region7: #{tpu_custom_call.1} parent=1 // pred_check_branch
      %17 = sbr.rel (0) target = $region9
    $region8: #{tpu_custom_call.1} parent=1 // pred_region
      _
    $region9: #{tpu_custom_call.1} parent=1 // pred_fallthru
      _
    // Predicated region
    $region10: #{tpu_custom_call.1} parent=1 // pred_check
      _
    $region11: #{tpu_custom_call.1} parent=1 // pred_check_branch
      %19 = sbr.rel (0) target = $region13
    $region12: #{tpu_custom_call.1} parent=1 // pred_region
      _
    $region13: #{tpu_custom_call.1} parent=1 // pred_fallthru
      _
    // Predicated region
    $region14: #{tpu_custom_call.1} parent=1 // pred_check
      _
    $region15: #{tpu_custom_call.1} parent=1 // pred_check_branch
      %21 = sbr.rel (0) target = $region17
    $region16: #{tpu_custom_call.1} parent=1 // pred_region
      _
    $region17: #{tpu_custom_call.1} parent=1 // pred_fallthru
      _
    // Predicated region
    $region18: #{tpu_custom_call.1} parent=1 // pred_check
      _
    $region19: #{tpu_custom_call.1} parent=1 // pred_check_branch
      %23 = sbr.rel (0) target = $region21
    $region20: #{tpu_custom_call.1} parent=1 // pred_region
      _
    $region21: #{tpu_custom_call.1} parent=1 // pred_fallthru
      _
    // Predicated region
    $region22: #{tpu_custom_call.1} parent=1 // pred_check
      _
    $region23: #{tpu_custom_call.1} parent=1 // pred_check_branch
      %25 = sbr.rel (0) target = $region25
    $region24: #{tpu_custom_call.1} parent=1 // pred_region
      _
    $region25: #{tpu_custom_call.1} parent=1 // pred_fallthru
      _
    // Predicated region
    $region26: #{tpu_custom_call.1} parent=1 // pred_check
      _
    $region27: #{tpu_custom_call.1} parent=1 // pred_check_branch
      %27 = sbr.rel (0) target = $region29
    $region28: #{tpu_custom_call.1} parent=1 // pred_region
      _
    $region29: #{tpu_custom_call.1} parent=1 // pred_fallthru
      _
    // Predicated region
    $region30: #{tpu_custom_call.1} parent=1 // pred_check
      _
    $region31: #{tpu_custom_call.1} parent=1 // pred_check_branch
      %29 = sbr.rel (0) target = $region33
    $region32: #{tpu_custom_call.1} parent=1 // pred_region
      _
    $region33: #{tpu_custom_call.1} parent=1 // pred_fallthru
      _
    %v30 = vld [vmem:[%s0] sm:$0xff]
    %v31 = vld [vmem:[%s0 + $0x8] sm:$0xff]
    %v32 = vld [vmem:[%s1] sm:$0xff]
    %v33 = vld [vmem:[%s1 + $0x8] sm:$0xff]
    %v34 = vld [vmem:[%s2] sm:$0xff]
    %v35 = vld [vmem:[%s2 + $0x8] sm:$0xff]
    %v36 = vld [vmem:[%s3] sm:$0xff]
    %v37 = vld [vmem:[%s3 + $0x8] sm:$0xff]
    %v38 = vld [vmem:[%s4] sm:$0xff]
    %v39 = vld [vmem:[%s4 + $0x8] sm:$0xff]
    %v40 = vld [vmem:[%s5] sm:$0xff]
    %v41 = vld [vmem:[%s5 + $0x8] sm:$0xff]
    %v42 = vld [vmem:[%s6] sm:$0xff]
    %v43 = vld [vmem:[%s6 + $0x8] sm:$0xff]
    %vm44 = vcmp.ne.f32.partialorder %v36, -10.0
    %vm45 = vcmp.ne.f32.partialorder %v37, -10.0
    %v46 = vsel %vm44, 1, 0
    %v47 = vsel %vm45, 1, 0
    %v48 = vcvt.s32.f32 %v46
    %v49 = vcvt.s32.f32 %v47
    %v50 = vadd.f32 %v48, 0.0
    %v51 = vadd.f32 %v49, 0.0
    %vm52 = vcmask 7168
    %v53 = vsel %vm52, %v50, 0.0
    %v54 = vsel %vm52, %v51, 0.0
    %v55 = vadd.f32 %v53, %v54
    %v56 = vrot.slane %v55, 4
    %v57 = vadd.f32 %v55, %v56
    %v58 = vrot.slane %v57, 2
    %v59 = vadd.f32 %v57, %v58
    %v60 = vrot.slane %v59, 1
    %v61 = vadd.f32 %v59, %v60
    %v62 = vrcp.pop %v61
    %v63 = vsub.f32 %v61, 1.0
    %v64 = vrcp.pop %v63
    %v65 = vmul.f32 %v30, %v48
    %v66 = vmul.f32 %v31, %v49
    %v67 = vadd.f32 %v65, 0.0
    %v68 = vadd.f32 %v66, 0.0
    %v69 = vsel %vm52, %v67, 0.0
    %v70 = vsel %vm52, %v68, 0.0
    %v71 = vadd.f32 %v69, %v70
    %v72 = vrot.slane %v71, 4
    %v73 = vadd.f32 %v71, %v72
    %v74 = vrot.slane %v73, 2
    %v75 = vadd.f32 %v73, %v74
    %v76 = vrot.slane %v75, 1
    %v77 = vadd.f32 %v75, %v76
    %v78 = vmul.f32 %v36, %v48
    %v79 = vmul.f32 %v37, %v49
    %v80 = vadd.f32 %v78, 0.0
    %v81 = vadd.f32 %v79, 0.0
    %v82 = vsel %vm52, %v80, 0.0
    %v83 = vsel %vm52, %v81, 0.0
    %v84 = vadd.f32 %v82, %v83
    %v85 = vrot.slane %v84, 4
    %v86 = vadd.f32 %v84, %v85
    %v87 = vrot.slane %v86, 2
    %v88 = vadd.f32 %v86, %v87
    %v89 = vrot.slane %v88, 1
    %v90 = vadd.f32 %v88, %v89
    %v91 = vmul.f32 %v77, %v62
    %v92 = vmul.f32 %v90, %v62
    %v93 = vsub.f32 %v30, %v91
    %v94 = vsub.f32 %v31, %v91
    %v95 = vmul.f32 %v93, %v48
    %v96 = vmul.f32 %v94, %v49
    %v97 = vsub.f32 %v36, %v92
    %v98 = vsub.f32 %v37, %v92
    %v99 = vmul.f32 %v97, %v48
    %v100 = vmul.f32 %v98, %v49
    %v101 = vmul.f32 %v95, %v99
    %v102 = vmul.f32 %v96, %v100
    %v103 = vadd.f32 %v101, 0.0
    %v104 = vadd.f32 %v102, 0.0
    %v105 = vsel %vm52, %v103, 0.0
    %v106 = vsel %vm52, %v104, 0.0
    %v107 = vadd.f32 %v105, %v106
    %v108 = vrot.slane %v107, 4
    %v109 = vadd.f32 %v107, %v108
    %v110 = vrot.slane %v109, 2
    %v111 = vadd.f32 %v109, %v110
    %v112 = vrot.slane %v111, 1
    %v113 = vadd.f32 %v111, %v112
    %v114 = vmul.f32 %v113, %v62
    %v115 = vmul.f32 %v95, %v95
    %v116 = vmul.f32 %v96, %v96
    %v117 = vadd.f32 %v115, 0.0
    %v118 = vadd.f32 %v116, 0.0
    %v119 = vsel %vm52, %v117, 0.0
    %v120 = vsel %vm52, %v118, 0.0
    %v121 = vadd.f32 %v119, %v120
    %v122 = vrot.slane %v121, 4
    %v123 = vadd.f32 %v121, %v122
    %v124 = vrot.slane %v123, 2
    %v125 = vadd.f32 %v123, %v124
    %v126 = vrot.slane %v125, 1
    %v127 = vadd.f32 %v125, %v126
    %v128 = vmul.f32 %v127, %v64
    %v129 = vmul.f32 %v99, %v99
    %v130 = vmul.f32 %v100, %v100
    %v131 = vadd.f32 %v129, 0.0
    %v132 = vadd.f32 %v130, 0.0
    %v133 = vsel %vm52, %v131, 0.0
    %v134 = vsel %vm52, %v132, 0.0
    %v135 = vadd.f32 %v133, %v134
    %v136 = vrot.slane %v135, 4
    %v137 = vadd.f32 %v135, %v136
    %v138 = vrot.slane %v137, 2
    %v139 = vadd.f32 %v137, %v138
    %v140 = vrot.slane %v139, 1
    %v141 = vadd.f32 %v139, %v140
    %v142 = vmul.f32 %v141, %v64
    %v143 = vmul.f32 %v114, 2.0
    %v144 = vadd.f32 %v128, %v142
    %v145 = vsub.f32 %v91, %v92
    %v146 = vmul.f32 %v145, %v145
    %v147 = vadd.f32 %v144, %v146
    %v148 = vrcp.pop %v147
    %v149 = vmul.f32 %v143, %v148
    %vm150 = vcmp.ne.f32.partialorder %v149, %v149
    %v151 = vsel %vm150, 0.0, %v149
    %v152 = vadd.f32 %v151, 0.0
    %s153 = vtos %v152
    %v154 = vadd.f32 %v61, 0.0
    %s155 = vtos %v154
    %vm156 = vcmp.ne.f32.partialorder %v38, -10.0
    %vm157 = vcmp.ne.f32.partialorder %v39, -10.0
    %v158 = vsel %vm156, 1, 0
    %v159 = vsel %vm157, 1, 0
    %v160 = vcvt.s32.f32 %v158
    %v161 = vcvt.s32.f32 %v159
    %v162 = vadd.f32 %v160, 0.0
    %v163 = vadd.f32 %v161, 0.0
    %v164 = vsel %vm52, %v162, 0.0
    %v165 = vsel %vm52, %v163, 0.0
    %v166 = vadd.f32 %v164, %v165
    %v167 = vrot.slane %v166, 4
    %v168 = vadd.f32 %v166, %v167
    %v169 = vrot.slane %v168, 2
    %v170 = vadd.f32 %v168, %v169
    %v171 = vrot.slane %v170, 1
    %v172 = vadd.f32 %v170, %v171
    %v173 = vrcp.pop %v172
    %v174 = vsub.f32 %v172, 1.0
    %v175 = vrcp.pop %v174
    %178 = vrot.lane.b32.xlu0 %v160, 1
    %v179 = vpop.permute.xlu0 %178
    %180 = vrot.lane.b32.xlu0 %v161, 1
    %v181 = vpop.permute.xlu0 %180
    %v184 = vmul.f32 %v30, %v179
    %v185 = vmul.f32 %v31, %v181
    %v186 = vadd.f32 %v184, 0.0
    %v187 = vadd.f32 %v185, 0.0
    %vm188 = vcmask 15368
    %v189 = vsel %vm188, %v186, 0.0
    %v190 = vsel %vm188, %v187, 0.0
    %v191 = vadd.f32 %v189, %v190
    %v192 = vrot.slane %v191, 4
    %v193 = vadd.f32 %v191, %v192
    %v194 = vrot.slane %v193, 2
    %v195 = vadd.f32 %v193, %v194
    %v196 = vrot.slane %v195, 1
    %v197 = vadd.f32 %v195, %v196
    %v198 = vmul.f32 %v38, %v160
    %v199 = vmul.f32 %v39, %v161
    %v200 = vadd.f32 %v198, 0.0
    %v201 = vadd.f32 %v199, 0.0
    %v202 = vsel %vm52, %v200, 0.0
    %v203 = vsel %vm52, %v201, 0.0
    %v204 = vadd.f32 %v202, %v203
    %v205 = vrot.slane %v204, 4
    %v206 = vadd.f32 %v204, %v205
    %v207 = vrot.slane %v206, 2
    %v208 = vadd.f32 %v206, %v207
    %v209 = vrot.slane %v208, 1
    %v210 = vadd.f32 %v208, %v209
    %212 = vrot.lane.b32.xlu0 %v173, 1
    %v213 = vpop.permute.xlu0 %212
    %v215 = vmul.f32 %v197, %v213
    %v216 = vmul.f32 %v210, %v173
    %v217 = vlaneseq
    %v218 = vshrl.u32 %v217, 7
    %v219 = vsub.s32 0, %v218
    %v220 = vrot.slane %v215, %v219
    %v221 = vsub.f32 %v30, %v220
    %v222 = vsub.f32 %v31, %v220
    %v223 = vmul.f32 %v221, %v179
    %v224 = vmul.f32 %v222, %v181
    %v225 = vsub.f32 %v38, %v216
    %v226 = vsub.f32 %v39, %v216
    %v227 = vmul.f32 %v225, %v160
    %v228 = vmul.f32 %v226, %v161
    %231 = vrot.lane.b32.xlu0 %v227, 1
    %v232 = vpop.permute.xlu0 %231
    %233 = vrot.lane.b32.xlu0 %v228, 1
    %v234 = vpop.permute.xlu0 %233
    %v237 = vmul.f32 %v223, %v232
    %v238 = vmul.f32 %v224, %v234
    %v239 = vadd.f32 %v237, 0.0
    %v240 = vadd.f32 %v238, 0.0
    %v241 = vsel %vm188, %v239, 0.0
    %v242 = vsel %vm188, %v240, 0.0
    %v243 = vadd.f32 %v241, %v242
    %v244 = vrot.slane %v243, 4
    %v245 = vadd.f32 %v243, %v244
    %v246 = vrot.slane %v245, 2
    %v247 = vadd.f32 %v245, %v246
    %v248 = vrot.slane %v247, 1
    %v249 = vadd.f32 %v247, %v248
    %v250 = vmul.f32 %v249, %v213
    %v251 = vmul.f32 %v223, %v223
    %v252 = vmul.f32 %v224, %v224
    %v253 = vadd.f32 %v251, 0.0
    %v254 = vadd.f32 %v252, 0.0
    %v255 = vsel %vm188, %v253, 0.0
    %v256 = vsel %vm188, %v254, 0.0
    %v257 = vadd.f32 %v255, %v256
    %v258 = vrot.slane %v257, 4
    %v259 = vadd.f32 %v257, %v258
    %v260 = vrot.slane %v259, 2
    %v261 = vadd.f32 %v259, %v260
    %v262 = vrot.slane %v261, 1
    %v263 = vadd.f32 %v261, %v262
    %265 = vrot.lane.b32.xlu0 %v175, 1
    %v266 = vpop.permute.xlu0 %265
    %v268 = vmul.f32 %v263, %v266
    %v269 = vmul.f32 %v227, %v227
    %v270 = vmul.f32 %v228, %v228
    %v271 = vadd.f32 %v269, 0.0
    %v272 = vadd.f32 %v270, 0.0
    %v273 = vsel %vm52, %v271, 0.0
    %v274 = vsel %vm52, %v272, 0.0
    %v275 = vadd.f32 %v273, %v274
    %v276 = vrot.slane %v275, 4
    %v277 = vadd.f32 %v275, %v276
    %v278 = vrot.slane %v277, 2
    %v279 = vadd.f32 %v277, %v278
    %v280 = vrot.slane %v279, 1
    %v281 = vadd.f32 %v279, %v280
    %v282 = vmul.f32 %v281, %v175
    %v283 = vmul.f32 %v250, 2.0
    %285 = vrot.lane.b32.xlu0 %v282, 1
    %v286 = vpop.permute.xlu0 %285
    %v288 = vadd.f32 %v268, %v286
    %290 = vrot.lane.b32.xlu0 %v216, 1
    %v291 = vpop.permute.xlu0 %290
    %v293 = vsub.f32 %v215, %v291
    %v294 = vmul.f32 %v293, %v293
    %v295 = vadd.f32 %v288, %v294
    %v296 = vrcp.pop %v295
    %v297 = vmul.f32 %v283, %v296
    %vm298 = vcmp.ne.f32.partialorder %v297, %v297
    %v299 = vsel %vm298, 0.0, %v297
    %v300 = vadd.f32 %v299, 0.0
    %302 = vrot.lane.b32.xlu0 %v300, 127
    %v303 = vpop.permute.xlu0 %302
    %s305 = vtos %v303
    %s306 = sadd.f32 %s153, %s305
    %s307 = smul.f32 %s306, 0.5
    %s308 = ssub.f32 1.0, %s307
    %vm309 = vcmp.ne.f32.partialorder %v40, -1.0
    %vm310 = vcmp.ne.f32.partialorder %v41, -1.0
    %v311 = vsel %vm309, 1, 0
    %v312 = vsel %vm310, 1, 0
    %v313 = vcvt.s32.f32 %v311
    %v314 = vcvt.s32.f32 %v312
    %v315 = vmax.f32 %v32, 0.0
    %v316 = vmax.f32 %v33, 0.0
    %v317 = vmul.f32 %v32, %v40
    %v318 = vmul.f32 %v33, %v41
    %v319 = vsub.f32 %v315, %v317
    %v320 = vsub.f32 %v316, %v318
    %v321 = vand.u32 2147483647, %v32
    %v322 = vand.u32 2147483647, %v33
    %v323 = vsub.f32 0.0, %v321
    %v324 = vsub.f32 0.0, %v322
    %v325 = vmul.f32 %v323, 1.442695
    %v326 = vpow.pop %v325
    %v327 = vmul.f32 %v324, 1.442695
    %v328 = vpow.pop %v327
    %v329 = vadd.f32 %v326, 1.0
    %v330 = vlog2.pop %v329
    %v331 = vmul.f32 %v330, 0.6931472
    %v332 = vmul.f32 -0.5, %v326
    %v333 = vadd.f32 %v332, 1.0
    %v334 = vmul.f32 %v333, %v326
    %v335 = vand.u32 2147483647, %v326
    %vm336 = vcmp.lt.f32.partialorder %v335, 0.0004427343
    %v337 = vsel %vm336, %v334, %v331
    %v338 = vadd.f32 %v328, 1.0
    %v339 = vlog2.pop %v338
    %v340 = vmul.f32 %v339, 0.6931472
    %v341 = vmul.f32 -0.5, %v328
    %v342 = vadd.f32 %v341, 1.0
    %v343 = vmul.f32 %v342, %v328
    %v344 = vand.u32 2147483647, %v328
    %vm345 = vcmp.lt.f32.partialorder %v344, 0.0004427343
    %v346 = vsel %vm345, %v343, %v340
    %v347 = vadd.f32 %v319, %v337
    %v348 = vadd.f32 %v320, %v346
    %v349 = vmul.f32 %v347, %v313
    %v350 = vmul.f32 %v348, %v314
    %vm351 = vcmask 64512
    %v352 = vsel %vm351, %v349, 0.0
    %353 = vadd.xlane.f32.xlu0 %v352
    %v354 = vpop.xlane.xlu0 %353
    %v355 = vsel %vm351, %v350, 0.0
    %356 = vadd.xlane.f32.xlu0 %v355
    %v357 = vpop.xlane.xlu0 %356
    %v358 = vadd.f32 %v354, %v357
    %v359 = vrot.slane %v358, 4
    %v360 = vadd.f32 %v358, %v359
    %v361 = vrot.slane %v360, 2
    %v362 = vadd.f32 %v360, %v361
    %v363 = vrot.slane %v362, 1
    %v364 = vadd.f32 %v362, %v363
    %v365 = vsel %vm351, %v313, 0.0
    %366 = vadd.xlane.f32.xlu0 %v365
    %v367 = vpop.xlane.xlu0 %366
    %v368 = vsel %vm351, %v314, 0.0
    %369 = vadd.xlane.f32.xlu0 %v368
    %v370 = vpop.xlane.xlu0 %369
    %v371 = vadd.f32 %v367, %v370
    %v372 = vrot.slane %v371, 4
    %v373 = vadd.f32 %v371, %v372
    %v374 = vrot.slane %v373, 2
    %v375 = vadd.f32 %v373, %v374
    %v376 = vrot.slane %v375, 1
    %v377 = vadd.f32 %v375, %v376
    %v378 = vmax.f32 %v377, 1.0
    %v379 = vrcp.pop %v378
    %v380 = vmul.f32 %v364, %v379
    %vm381 = vcmp.gt.f32.partialorder %v377, 0.0
    %v382 = vsel %vm381, %v380, 0.0
    %v383 = vadd.f32 %v382, 0.0
    %s384 = vtos %v383
    %v385 = vadd.f32 %v377, 0.0
    %s386 = vtos %v385
    %s387 = smul.f32 %s386, 0.125
    %vm388 = vcmp.ne.s32.totalorder %v42, 4294967295
    %vm389 = vcmp.ne.s32.totalorder %v43, 4294967295
    %v390 = vsel %vm388, 1, 0
    %v391 = vsel %vm389, 1, 0
    %v392 = vcvt.s32.f32 %v390
    %v393 = vcvt.s32.f32 %v391
    %v394 = vsel %vm351, %v34, -inf
    %395 = vmax.xlane.f32.xlu0 %v394
    %v396 = vpop.xlane.xlu0 %395
    %v397 = vsel %vm351, %v35, -inf
    %398 = vmax.xlane.f32.xlu0 %v397
    %v399 = vpop.xlane.xlu0 %398
    %v400 = vsub.f32 %v34, %v396
    %v401 = vsub.f32 %v35, %v399
    %v402 = vmul.f32 %v400, 1.442695
    %v403 = vpow.pop %v402
    %v404 = vmul.f32 %v401, 1.442695
    %v405 = vpow.pop %v404
    %v406 = vsel %vm351, %v403, 0.0
    %407 = vadd.xlane.f32.xlu0 %v406
    %v408 = vpop.xlane.xlu0 %407
    %v409 = vsel %vm351, %v405, 0.0
    %410 = vadd.xlane.f32.xlu0 %v409
    %v411 = vpop.xlane.xlu0 %410
    %v412 = vlog2.pop %v408
    %v413 = vmul.f32 %v412, 0.6931472
    %v414 = vlog2.pop %v411
    %v415 = vmul.f32 %v414, 0.6931472
    %v416 = vadd.f32 %v396, %v413
    %v417 = vadd.f32 %v399, %v415
    %v418 = vlaneseq
    %v419 = vand.u32 %v418, 127
    %420 = vset.pattern.permute.xlu0 0
    %421 = vperm.xlu0 %420, %v42
    %v422 = vpop.permute.xlu0 %421
    %423 = vset.pattern.permute.xlu0 0
    %424 = vperm.xlu0 %423, %v43
    %v425 = vpop.permute.xlu0 %424
    %vm426 = vcmp.eq.s32.totalorder %v419, %v422
    %vm427 = vcmp.eq.s32.totalorder %v419, %v425
    %v428 = vsel %vm426, 1, 0
    %v429 = vsel %vm427, 1, 0
    %v430 = vcvt.s32.f32 %v428
    %v431 = vcvt.s32.f32 %v429
    %v432 = vmul.f32 %v34, %v430
    %v433 = vmul.f32 %v35, %v431
    %v434 = vsel %vm351, %v432, 0.0
    %435 = vadd.xlane.f32.xlu0 %v434
    %v436 = vpop.xlane.xlu0 %435
    %v437 = vsel %vm351, %v433, 0.0
    %438 = vadd.xlane.f32.xlu0 %v437
    %v439 = vpop.xlane.xlu0 %438
    %v440 = vsub.f32 %v416, %v436
    %v441 = vsub.f32 %v417, %v439
    %v442 = vmul.f32 %v440, %v392
    %v443 = vmul.f32 %v441, %v393
    %v444 = vadd.f32 %v442, 0.0
    %v445 = vadd.f32 %v443, 0.0
    %v446 = vsel %vm52, %v444, 0.0
    %v447 = vsel %vm52, %v445, 0.0
    %v448 = vadd.f32 %v446, %v447
    %v449 = vrot.slane %v448, 4
    %v450 = vadd.f32 %v448, %v449
    %v451 = vrot.slane %v450, 2
    %v452 = vadd.f32 %v450, %v451
    %v453 = vrot.slane %v452, 1
    %v454 = vadd.f32 %v452, %v453
    %v455 = vadd.f32 %v392, 0.0
    %v456 = vadd.f32 %v393, 0.0
    %v457 = vsel %vm52, %v455, 0.0
    %v458 = vsel %vm52, %v456, 0.0
    %v459 = vadd.f32 %v457, %v458
    %v460 = vrot.slane %v459, 4
    %v461 = vadd.f32 %v459, %v460
    %v462 = vrot.slane %v461, 2
    %v463 = vadd.f32 %v461, %v462
    %v464 = vrot.slane %v463, 1
    %v465 = vadd.f32 %v463, %v464
    %v466 = vmax.f32 %v465, 1.0
    %v467 = vrcp.pop %v466
    %v468 = vmul.f32 %v454, %v467
    %vm469 = vcmp.gt.f32.partialorder %v465, 0.0
    %v470 = vsel %vm469, %v468, nan
    %v471 = vadd.f32 %v470, 0.0
    %s472 = vtos %v471
    %v473 = vld [vmem:[%s7] sm:$0x1]
    %v474 = vmul.f32 %v473, -2.0
    %v475 = vmul.f32 %v474, 1.442695
    %v476 = vpow.pop %v475
    %v477 = vmul.f32 %v476, 0.5
    %v478 = vmul.f32 %v473, %v473
    %vm479 = vcmask 24576
    %v480 = vsel %vm479, %v478, 0.0
    %481 = vadd.xlane.f32.xlu0 %v480
    %v482 = vpop.xlane.xlu0 %481
    %v483 = vrot.slane %v482, 4
    %v484 = vadd.f32 %v482, %v483
    %v485 = vrot.slane %v484, 2
    %v486 = vadd.f32 %v484, %v485
    %v487 = vrot.slane %v486, 1
    %v488 = vadd.f32 %v486, %v487
    %s489 = vtos %v488
    %s490 = smul.f32 %s489, 0.5
    %v491 = vadd.f32 %v477, 0.0
    %s492 = vtos %v491
    %494 = vrot.lane.b32.xlu0 %v491, 127
    %v495 = vpop.permute.xlu0 %494
    %s497 = vtos %v495
    %498 = vrot.lane.b32.xlu0 %v491, 126
    %v499 = vpop.permute.xlu0 %498
    %s501 = vtos %v499
    %s502 = smul.f32 %s492, %s308
    %s503 = smul.f32 %s497, %s384
    %s504 = sadd.f32 %s502, %s503
    %s505 = smul.f32 %s501, %s472
    %s506 = sadd.f32 %s504, %s505
    %s507 = sadd.f32 %s506, %s490
    %s508 = scalar_lea.smem [#allocation2], 0
    %509 = sst [smem:[%s508]] %s507
    %s510 = scalar_lea.smem [#allocation2], 1
    %511 = sst [smem:[%s510]] %s308
    %s512 = scalar_lea.smem [#allocation2], 2
    %513 = sst [smem:[%s512]] %s153
    %s514 = scalar_lea.smem [#allocation2], 3
    %515 = sst [smem:[%s514]] %s305
    %s516 = scalar_lea.smem [#allocation2], 4
    %517 = sst [smem:[%s516]] %s384
    %s518 = scalar_lea.smem [#allocation2], 5
    %519 = sst [smem:[%s518]] %s472
    %s520 = scalar_lea.smem [#allocation2], 6
    %521 = sst [smem:[%s520]] %s155
    %s522 = scalar_lea.smem [#allocation2], 7
    %523 = sst [smem:[%s522]] %s387
    // Predicated region
    $region34: #{tpu_custom_call.1} parent=1 // pred_check
      _
    $region35: #{tpu_custom_call.1} parent=1 // pred_check_branch
      %525 = sbr.rel (0) target = $region37
    $region36: #{tpu_custom_call.1} parent=1 // pred_region
      %s527 = ssub.s32 16, 16
      %528 = vsyncadd [#allocation3], %s527
      %531 = dma.smem_to_hbm [#allocation2], 16, %s8, [#allocation3]
    $region37: #{tpu_custom_call.1} parent=1 // pred_fallthru
      _
    // Predicated region
    $region38: #{tpu_custom_call.1} parent=1 // pred_check
      _
    $region39: #{tpu_custom_call.1} parent=1 // pred_check_branch
      %533 = sbr.rel (0) target = $region41
    $region40: #{tpu_custom_call.1} parent=1 // pred_region
      %534 = dma.done [#allocation3], 16
    $region41: #{tpu_custom_call.1} parent=1 // pred_fallthru
      _
    %535 = sfence
    %536 = vsyncpa [#allocation3], 1

</llo_original>
